<compile_context>
chip_gen: v7x
topology: tpu7x:2x2x1
jax: 0.10.0
libtpu: 0.0.40
codegen_flags: <defaults>
</compile_context>

<pallas_src>
import jax
import jax.numpy as jnp
from jax.experimental import pallas as pl
from jax.experimental.pallas import tpu as pltpu


# Above this size, split the HBM->HBM copy into up to 4 concurrent DMAs along
# the leading axis so DMA issue latency is hidden behind the first transfer.
_SPLIT_BYTES = 8 * 1024 * 1024
_MAX_DMA_CHUNKS = 4


def _dma_identity(x: jax.Array) -> jax.Array:
    """Identity via a direct HBM->HBM async copy (no VMEM staging, no grid)."""
    shape, dtype = x.shape, x.dtype
    nbytes = x.size * dtype.itemsize

    # Decide (at trace time) how many DMA chunks to issue along axis 0.
    n_chunks = 1
    if len(shape) >= 1 and shape[0] >= 2 and nbytes > _SPLIT_BYTES:
        n_chunks = min(_MAX_DMA_CHUNKS, shape[0])
        while n_chunks > 1 and shape[0] % n_chunks != 0:
            n_chunks -= 1
    chunk = shape[0] // n_chunks if (len(shape) >= 1 and n_chunks > 1) else 0

    def kernel(x_hbm, o_hbm, sems):
        if n_chunks == 1:
            cp = pltpu.make_async_copy(x_hbm, o_hbm, sems.at[0])
            cp.start()
            cp.wait()
        else:
            copies = [
                pltpu.make_async_copy(
                    x_hbm.at[pl.ds(c * chunk, chunk)],
                    o_hbm.at[pl.ds(c * chunk, chunk)],
                    sems.at[c],
                )
                for c in range(n_chunks)
            ]
            for cp in copies:   # issue all DMAs first ...
                cp.start()
            for cp in copies:   # ... then wait, so transfers overlap
                cp.wait()

    return pl.pallas_call(
        kernel,
        out_shape=jax.ShapeDtypeStruct(shape, dtype),
        in_specs=[pl.BlockSpec(memory_space=pl.ANY)],   # raw HBM ref, no auto-DMA
        out_specs=pl.BlockSpec(memory_space=pl.ANY),    # raw HBM ref, no auto-DMA
        scratch_shapes=[pltpu.SemaphoreType.DMA((n_chunks,))],
        cost_estimate=pl.CostEstimate(
            flops=0, transcendentals=0, bytes_accessed=2 * nbytes
        ),
    )(x)


# Primary Pallas forward: keeps the caller's input alive, copies at HBM
# roofline with zero VMEM footprint on every generation (v5e / v6e / v7x).
policy_forward = jax.jit(_dma_identity)


# Zero-cost variant (review item 6): when the caller can donate its buffer,
# the identity needs no kernel at all — XLA aliases output to input and the
# whole op is elided.  Callers must NOT reuse the argument after this call.
policy_forward_donated = jax.jit(lambda x: x, donate_argnums=0)


# TODO(synk): act()/train() paths (VAE encode, MDN-LSTM rollout, CMA-ES
# controller training) are not part of forward() and are intentionally not
# implemented.


if __name__ == "__main__":
    key = jax.random.PRNGKey(0)
    # NCHW observation batch consistent with input_channels=3:
    # (batch=2, channels=3, H=16, W=16).
    x = jax.random.normal(key, (2, 3, 16, 16), dtype=jnp.float32)
    x_expected = jnp.array(x, copy=True)
    jax.block_until_ready((x, x_expected))

    # Primary path: direct HBM->HBM DMA identity (input stays alive).
    y = jax.block_until_ready(policy_forward(x))
    assert y.shape == x.shape, (y.shape, x.shape)
    assert y.dtype == x.dtype, (y.dtype, x.dtype)
    assert bool(jnp.array_equal(y, x)), "DMA identity mismatch"

    # Zero-cost path: donated buffer alias (no Pallas call).  x_expected is
    # donated here and must not be used afterwards; compare against y.
    y2 = jax.block_until_ready(policy_forward_donated(x_expected))
    assert y2.shape == y.shape, (y2.shape, y.shape)
    assert y2.dtype == y.dtype, (y2.dtype, y.dtype)
    assert bool(jnp.array_equal(y2, y)), "donated identity mismatch"

    print("KERNEL_OK")
</pallas_src>

<mosaic_0001>
module attributes {stable_mosaic.version = 11 : i64} {
  func.func @kernel(%arg0: memref<2x3x16x16xf32, #tpu.memory_space<any>>, %arg1: memref<2x3x16x16xf32, #tpu.memory_space<any>>, %arg2: memref<1x!tpu.dma_semaphore, #tpu.memory_space<semaphore_mem>>) attributes {dimension_semantics = [], scalar_prefetch = 0 : i64, scratch_operands = 1 : i64, tpu.core_type = #tpu.core_type<tc>} {
    %c0_i32 = arith.constant 0 : i32
    %0 = tpu.memref_slice %arg2[%c0_i32] : memref<1x!tpu.dma_semaphore, #tpu.memory_space<semaphore_mem>> -> memref<1x!tpu.dma_semaphore, #tpu.memory_space<semaphore_mem>>
    %1 = tpu.memref_squeeze %0 : memref<1x!tpu.dma_semaphore, #tpu.memory_space<semaphore_mem>> -> memref<!tpu.dma_semaphore, #tpu.memory_space<semaphore_mem>>
    tpu.enqueue_dma source(%arg0 : memref<2x3x16x16xf32, #tpu.memory_space<any>>) target(%arg1 : memref<2x3x16x16xf32, #tpu.memory_space<any>>) target_semaphore(%1 : memref<!tpu.dma_semaphore, #tpu.memory_space<semaphore_mem>>)
    %c0_i32_0 = arith.constant 0 : i32
    %2 = tpu.memref_slice %arg2[%c0_i32_0] : memref<1x!tpu.dma_semaphore, #tpu.memory_space<semaphore_mem>> -> memref<1x!tpu.dma_semaphore, #tpu.memory_space<semaphore_mem>>
    %3 = tpu.memref_squeeze %2 : memref<1x!tpu.dma_semaphore, #tpu.memory_space<semaphore_mem>> -> memref<!tpu.dma_semaphore, #tpu.memory_space<semaphore_mem>>
    tpu.wait_dma2 semaphore(%3 : memref<!tpu.dma_semaphore, #tpu.memory_space<semaphore_mem>>) src(%arg0 : memref<2x3x16x16xf32, #tpu.memory_space<any>>) dst(%arg1 : memref<2x3x16x16xf32, #tpu.memory_space<any>>)
    return
  }
}

</mosaic_0001>

<llo_original>
// kernel: _dma_identity.1
$region0: #{_dma_identity.1}
  #allocation0 [shape = 'u32[]', space=smem, size = 0x4, offset = 0x4, fixed_abs, tag = 'smem constant byte address 0x4 - core index']
  #allocation1 [shape = 'u32[144,128]{1,0:T(1,128)}', space=vmem, size = 0x12000, scoped, tag = 'internal scratch']
  #allocation2 [shape = 's32[1]{0}', space=sflag, size = 0x4, scoped, tag = 'scratch operand']
  #allocation3 [shape = 's32[]', space=sflag, size = 0x4, offset = 0, fixed_abs, tag = 'sflag constant byte address 0x0 - dummy sync flag']
  #allocation4 [shape = 'u32[0]{0}', space=smem, size = 0, offset = 0, fixed_abs, tag = 'smem constant byte address 0x0 - null']
  %s0 = inlined_call_operand.hbm [shape: f32[2,3,16,16], index: 0, kind: input, shape index: {}]
  %s1 = inlined_call_operand.hbm [shape: f32[2,3,16,16], index: 1, kind: output, shape index: {}]
  %s2 = sld [smem:[#allocation0]]
  $region2: #{_dma_identity.1} parent=0
    _
  %s4 = ssub.s32 1, %s2
  %s5 = scalar_select 0, %s4, %s2
  %s7 = sshll.u32 1, 14
  %s8 = sxor.u32 4294967295, %s7
  %s11 = sshll.u32 3, 24
  %s12 = sxor.u32 4294967295, %s11
  %s13 = sand.u32 0, %s12
  %s15 = sor.u32 %s13, 0
  %18 = dma.general %s0, 1536, %s1, [#allocation2], [#allocation3], [#allocation4], %s15, 0
  %s19 = smul.u32 2, 3
  %s20 = smul.u32 %s19, 16
  %s21 = smul.u32 %s20, 1
  %s22 = sshll.u32 %s21, 4
  %23 = dma.done [#allocation2], %s22
  %24 = vsyncmov [#allocation2]
  %s25 = vpop.sfrf %24
  %p26 = scmp.eq.s32.totalorder %s25, 0
  %p27 = pneg %p26
  %29 = shalt.err (%p27)

</llo_original>
